<compile_context>
chip_gen: v6e
topology: v6e:2x2x1
jax: 0.10.0
libtpu: 0.0.40
codegen_flags: <defaults>
</compile_context>

<pallas_src>
import functools

import jax
import jax.numpy as jnp
from jax.experimental import pallas as pl
from jax.experimental.pallas import tpu as pltpu  # noqa: F401  (kept for TPU-specific tuning hooks)

# ----- small synthetic hyperparameters (original: H=768, F=200, T=len(all_triggers)) -----
B = 2     # batch
S = 8     # sequence length
H = 32    # hidden_size
F = 16    # feature_t
KW = 3    # window_t (conv kernel width, padding=1)
T = 8     # trigger_size (synthetic stand-in for len(all_triggers))

LANE = 128


def _round_up(x, m):
    return ((x + m - 1) // m) * m


# ---------------------------------------------------------------------------
# Fused kernel: conv (one wide dot) + tanh + prefix/suffix max + pooling
# interleave + Linear, all in a single invocation over the whole batch.
# ---------------------------------------------------------------------------
def _dmcnn_t_kernel(x_ref, wcat_ref, cb_ref, wperm_ref, lwsum_ref, lb_ref,
                    o_ref, *, batch, seq, feat):
    n = batch * seq
    f_pad = cb_ref.shape[-1]
    fb = feat // batch

    # --- Conv1d(k=3, padding=1): one (B*S, H) @ (H, 3*F_pad) MXU dot ---
    y = jnp.dot(x_ref[...], wcat_ref[...],
                preferred_element_type=jnp.float32)           # (B*S, 3*F_pad)
    y_prev = y[:, 0 * f_pad:1 * f_pad]     # tap applied to x[s-1]
    y_mid = y[:, 1 * f_pad:2 * f_pad]      # tap applied to x[s]
    y_next = y[:, 2 * f_pad:3 * f_pad]     # tap applied to x[s+1]

    s_mod = jax.lax.broadcasted_iota(jnp.int32, (n, f_pad), 0) % seq

    # Row shifts over the flattened (B*S) axis; batch-boundary leakage is
    # masked with the (row % S) predicate.
    # TODO(synk): pltpu.roll(axis=0) would map these to the XLU rotate slot;
    # slice+concat is kept for lowering robustness at these tiny shapes.
    def shift_down(v, d):                  # out[i] = v[i - d]
        return jnp.concatenate(
            [jnp.zeros((d, f_pad), jnp.float32), v[:n - d]], axis=0)

    def shift_up(v, d):                    # out[i] = v[i + d]
        return jnp.concatenate(
            [v[d:], jnp.zeros((d, f_pad), jnp.float32)], axis=0)

    contrib_prev = jnp.where(s_mod >= 1, shift_down(y_prev, 1), 0.0)
    contrib_next = jnp.where(s_mod <= seq - 2, shift_up(y_next, 1), 0.0)
    c = jnp.tanh(contrib_prev + y_mid + contrib_next + cb_ref[...])   # (B*S, F_pad)

    # --- log-depth per-batch prefix / suffix max (vectorized scan) ---
    pre = c
    d = 1
    while d < seq:
        pre = jnp.maximum(pre, jnp.where(s_mod >= d, shift_down(pre, d), -jnp.inf))
        d *= 2
    suf = c
    d = 1
    while d < seq:
        suf = jnp.maximum(suf, jnp.where(s_mod < seq - d, shift_up(suf, d), -jnp.inf))
        d *= 2
    # right[b*S + p] = max c[b, p+1 .. S-1]; rows with p == S-1 are unused
    # (their output rows are overwritten by the gmax path below).
    right = shift_up(suf, 1)

    # --- pooling interleave folded into a shared row-permuted Linear weight ---
    # pooled[b, p, j*FB + g] = src_j[p, b*FB + g], with
    # src = [left_0 .. left_{B-1}, right_0 .. right_{B-1}] and FB = F // B.
    # The matching lane permutation of the Linear weight lives in wperm.
    blocks = []
    for b in range(batch):
        parts = [pre[j * seq:(j + 1) * seq, b * fb:(b + 1) * fb]
                 for j in range(batch)]
        parts += [right[j * seq:(j + 1) * seq, b * fb:(b + 1) * fb]
                  for j in range(batch)]
        blocks.append(jnp.concatenate(parts, axis=-1))        # (S, 2F)
    pooled = jnp.concatenate(blocks, axis=0)                  # (B*S, 2F)

    lb = lb_ref[...]                                          # (1, T_pad)
    mixed = jnp.dot(pooled.astype(jnp.bfloat16), wperm_ref[...],
                    preferred_element_type=jnp.float32)       # (B*S, T_pad)
    o_ref[...] = mixed + lb

    # Last pooled position per batch is [gmax, gmax] (NOT interleaved): one
    # tiny dot against (W_left + W_right), then B single-row overwrites.
    gm = jnp.concatenate(
        [pre[(b + 1) * seq - 1:(b + 1) * seq, :] for b in range(batch)],
        axis=0)                                               # (B, F_pad)
    plain = jnp.dot(gm.astype(jnp.bfloat16), lwsum_ref[...],
                    preferred_element_type=jnp.float32)       # (B, T_pad)
    for b in range(batch):
        o_ref[(b + 1) * seq - 1:(b + 1) * seq, :] = plain[b:b + 1, :] + lb


# ---------------------------------------------------------------------------
# One-time parameter preparation (outside the per-call hot path)
# ---------------------------------------------------------------------------
def prepare_params(params, batch_size):
    conv_w = params["conv_w"].astype(jnp.float32)   # (F, H, KW)  PyTorch Conv1d layout
    conv_b = params["conv_b"].astype(jnp.float32)   # (F,)
    lin_w = params["lin_w"].astype(jnp.float32)     # (T, 2F)     PyTorch Linear layout
    lin_b = params["lin_b"].astype(jnp.float32)     # (T,)

    f_, h_, kw = conv_w.shape
    t_ = lin_w.shape[0]
    b_ = batch_size
    f_pad = _round_up(f_, LANE)
    t_pad = _round_up(t_, LANE)

    # Conv taps flattened into one lane-aligned (H, KW*F_pad) matrix.
    wcat = jnp.zeros((h_, kw * f_pad), jnp.float32)
    for k in range(kw):
        wcat = wcat.at[:, k * f_pad:k * f_pad + f_].set(conv_w[:, :, k].T)
    cb = jnp.zeros((1, f_pad), jnp.float32).at[0, :f_].set(conv_b)

    # The module's cat([prefix,suffix],0).t().view(B,1,-1) interleave sends
    # output lane k of batch b to source j = (b*2F+k) % (2B) at feature
    # f = (b*2F+k) // (2B).  With F % B == 0 this is a contiguous F/B feature
    # window per batch plus ONE shared row permutation of the Linear weight.
    # TODO(synk): general F % B != 0 would need an explicit in-kernel lane gather.
    assert f_ % b_ == 0, "pooling-interleave fold requires feature_t % batch == 0"
    fb = f_ // b_
    perm = jnp.array([g * (2 * b_) + j for j in range(2 * b_) for g in range(fb)],
                     dtype=jnp.int32)
    wperm = jnp.zeros((2 * f_, t_pad), jnp.float32).at[:, :t_].set(lin_w[:, perm].T)

    # Last pooled position is [gmax, gmax] -> fold into W_left + W_right.
    lwsum = jnp.zeros((f_pad, t_pad), jnp.float32).at[:f_, :t_].set(
        (lin_w[:, :f_] + lin_w[:, f_:]).T)
    lb = jnp.zeros((1, t_pad), jnp.float32).at[0, :t_].set(lin_b)

    # Matmul operands stored bf16 (MXU-native, half the weight DMA);
    # accumulation stays f32 inside the kernel.
    return {"wcat": wcat.astype(jnp.bfloat16), "cb": cb,
            "wperm": wperm.astype(jnp.bfloat16),
            "lwsum": lwsum.astype(jnp.bfloat16), "lb": lb}


# ---------------------------------------------------------------------------
# Forward pass (mirrors dmcnn_t.forward, eval mode)
# ---------------------------------------------------------------------------
@functools.partial(jax.jit, static_argnames=("trigger_size", "feature_t"))
def dmcnn_t_forward(emb, prepped, trigger_size, feature_t):
    b_, s_, h_ = emb.shape
    t_pad = prepped["lb"].shape[1]

    x2d = emb.reshape(b_ * s_, h_).astype(jnp.bfloat16)
    kernel = functools.partial(_dmcnn_t_kernel, batch=b_, seq=s_, feat=feature_t)

    # One fused kernel invocation: at these tiny shapes a single step over the
    # whole batch is fastest (launch/step overhead dominated); everything fits
    # comfortably in VMEM with whole-array blocks.
    out2d = pl.pallas_call(
        kernel,
        out_shape=jax.ShapeDtypeStruct((b_ * s_, t_pad), jnp.float32),
    )(x2d, prepped["wcat"], prepped["cb"], prepped["wperm"],
      prepped["lwsum"], prepped["lb"])

    # TODO(synk): nn.Dropout(p=0.5) is identity in eval mode; training-mode random dropout omitted.
    return out2d.reshape(b_, s_, t_pad)[:, :, :trigger_size]


# ---------------------------------------------------------------------------
# Pure-JAX reference mirroring the PyTorch code step by step (eval mode)
# ---------------------------------------------------------------------------
def reference_forward(emb, params):
    conv_w, conv_b = params["conv_w"], params["conv_b"]
    lin_w, lin_b = params["lin_w"], params["lin_b"]
    b_, s_, h_ = emb.shape

    x = jnp.transpose(emb, (0, 2, 1))                                 # (B, H, S)
    xp = jnp.pad(x, ((0, 0), (0, 0), (1, 1)))
    conv = sum(
        jnp.einsum("bhs,fh->bfs", xp[:, :, k:k + s_], conv_w[:, :, k])
        for k in range(KW)
    ) + conv_b[None, :, None]
    c = jnp.transpose(jnp.tanh(conv), (0, 2, 1))                      # (B, S, F)

    conv_l = []
    for i in range(1, s_):
        xm = jnp.max(c[:, :i, :], axis=1)                             # (B, F)
        ym = jnp.max(c[:, i:, :], axis=1)                             # (B, F)
        z = jnp.concatenate([xm, ym], axis=0).T.reshape(b_, 1, -1)
        conv_l.append(z)
    gm = jnp.max(c, axis=1)
    conv_l.append(jnp.concatenate([gm, gm], axis=1).reshape(b_, 1, -1))
    pooled = jnp.stack(conv_l)                                        # (S, B, 1, 2F)
    pooled = jnp.transpose(pooled.squeeze(-2), (1, 0, 2))             # (B, S, 2F)
    return pooled @ lin_w.T + lin_b


if __name__ == "__main__":
    key = jax.random.PRNGKey(0)
    k1, k2, k3, k4, k5 = jax.random.split(key, 5)
    params = {
        "conv_w": jax.random.normal(k1, (F, H, KW), jnp.float32) * 0.1,
        "conv_b": jax.random.normal(k2, (F,), jnp.float32) * 0.1,
        "lin_w": jax.random.normal(k3, (T, 2 * F), jnp.float32) * 0.1,
        "lin_b": jax.random.normal(k4, (T,), jnp.float32) * 0.1,
    }
    emb = jax.random.normal(k5, (B, S, H), jnp.float32)

    prepped = prepare_params(params, batch_size=B)
    logits = jax.block_until_ready(
        dmcnn_t_forward(emb, prepped, trigger_size=T, feature_t=F))
    ref = jax.block_until_ready(reference_forward(emb, params))

    assert logits.shape == (B, S, T), logits.shape
    max_err = float(jnp.max(jnp.abs(logits - ref)))
    # bf16 matmul operands (f32 accumulation) -> slightly looser tolerance than pure f32.
    assert jnp.allclose(logits, ref, rtol=3e-2, atol=3e-2), max_err
    print("KERNEL_OK")
</pallas_src>

<mosaic_0001>
module attributes {stable_mosaic.version = 11 : i64} {
  func.func @_dmcnn_t_kernel(%arg0: memref<16x32xbf16, #tpu.memory_space<vmem>>, %arg1: memref<32x384xbf16, #tpu.memory_space<vmem>>, %arg2: memref<1x128xf32, #tpu.memory_space<vmem>>, %arg3: memref<32x128xbf16, #tpu.memory_space<vmem>>, %arg4: memref<128x128xbf16, #tpu.memory_space<vmem>>, %arg5: memref<1x128xf32, #tpu.memory_space<vmem>>, %arg6: memref<16x128xf32, #tpu.memory_space<vmem>>) attributes {dimension_semantics = [], scalar_prefetch = 0 : i64, scratch_operands = 0 : i64, tpu.core_type = #tpu.core_type<tc>} {
    %c0 = arith.constant 0 : index
    %c0_0 = arith.constant 0 : index
    %0 = vector.load %arg0[%c0, %c0_0] : memref<16x32xbf16, #tpu.memory_space<vmem>>, vector<16x32xbf16>
    %c0_1 = arith.constant 0 : index
    %c0_2 = arith.constant 0 : index
    %1 = vector.load %arg1[%c0_1, %c0_2] : memref<32x384xbf16, #tpu.memory_space<vmem>>, vector<32x384xbf16>
    %cst = arith.constant dense<0.000000e+00> : vector<16x384xf32>
    %2 = tpu.matmul %0, %1, %cst {dimension_numbers = #tpu.dot_dimension_numbers<[1], [0], [0], [1], [0, 0, 1, 1], [], []>} : vector<16x32xbf16>, vector<32x384xbf16>, vector<16x384xf32> -> vector<16x384xf32>
    %3 = vector.extract_strided_slice %2 {offsets = [0, 0], sizes = [16, 128], strides = [1, 1]} : vector<16x384xf32> to vector<16x128xf32>
    %4 = vector.extract_strided_slice %2 {offsets = [0, 128], sizes = [16, 128], strides = [1, 1]} : vector<16x384xf32> to vector<16x128xf32>
    %5 = vector.extract_strided_slice %2 {offsets = [0, 256], sizes = [16, 128], strides = [1, 1]} : vector<16x384xf32> to vector<16x128xf32>
    %6 = tpu.iota {dimensions = array<i32: 0>} : vector<16x128xi32>
    %c8_i32 = arith.constant 8 : i32
    %c0_i32 = arith.constant 0 : i32
    %7 = arith.cmpi eq, %c8_i32, %c0_i32 : i32
    %c1_i32 = arith.constant 1 : i32
    %8 = arith.select %7, %c1_i32, %c8_i32 : i32
    %9 = vector.broadcast %8 : i32 to vector<16x128xi32>
    %10 = arith.remsi %6, %9 : vector<16x128xi32>
    %c0_i32_3 = arith.constant 0 : i32
    %11 = vector.broadcast %c0_i32_3 : i32 to vector<16x128xi32>
    %12 = arith.cmpi ne, %10, %11 : vector<16x128xi32>
    %c0_i32_4 = arith.constant 0 : i32
    %13 = vector.broadcast %c0_i32_4 : i32 to vector<16x128xi32>
    %14 = arith.cmpi slt, %10, %13 : vector<16x128xi32>
    %c0_i32_5 = arith.constant 0 : i32
    %15 = arith.cmpi slt, %8, %c0_i32_5 : i32
    %16 = vector.broadcast %15 : i1 to vector<16x128xi1>
    %17 = vector.broadcast %16 : vector<16x128xi1> to vector<16x128xi1>
    %18 = arith.xori %14, %17 : vector<16x128xi1>
    %19 = arith.andi %18, %12 : vector<16x128xi1>
    %20 = vector.broadcast %8 : i32 to vector<16x128xi32>
    %21 = arith.addi %10, %20 : vector<16x128xi32>
    %22 = arith.select %19, %21, %10 : vector<16x128xi1>, vector<16x128xi32>
    %c1_i32_6 = arith.constant 1 : i32
    %23 = vector.broadcast %c1_i32_6 : i32 to vector<16x128xi32>
    %24 = arith.cmpi sge, %22, %23 : vector<16x128xi32>
    %cst_7 = arith.constant 0.000000e+00 : f32
    %25 = vector.broadcast %cst_7 : f32 to vector<1x128xf32>
    %26 = vector.extract_strided_slice %3 {offsets = [0, 0], sizes = [15, 128], strides = [1, 1]} : vector<16x128xf32> to vector<15x128xf32>
    %27 = tpu.concatenate %25, %26 in 0 : vector<1x128xf32>, vector<15x128xf32> -> vector<16x128xf32>
    %cst_8 = arith.constant 0.000000e+00 : f32
    %28 = vector.broadcast %cst_8 : f32 to vector<16x128xf32>
    %29 = arith.select %24, %27, %28 : vector<16x128xi1>, vector<16x128xf32>
    %c6_i32 = arith.constant 6 : i32
    %30 = vector.broadcast %c6_i32 : i32 to vector<16x128xi32>
    %31 = arith.cmpi sle, %22, %30 : vector<16x128xi32>
    %32 = vector.extract_strided_slice %5 {offsets = [1, 0], sizes = [15, 128], strides = [1, 1]} : vector<16x128xf32> to vector<15x128xf32>
    %cst_9 = arith.constant 0.000000e+00 : f32
    %33 = vector.broadcast %cst_9 : f32 to vector<1x128xf32>
    %34 = tpu.concatenate %32, %33 in 0 : vector<15x128xf32>, vector<1x128xf32> -> vector<16x128xf32>
    %cst_10 = arith.constant 0.000000e+00 : f32
    %35 = vector.broadcast %cst_10 : f32 to vector<16x128xf32>
    %36 = arith.select %31, %34, %35 : vector<16x128xi1>, vector<16x128xf32>
    %37 = arith.addf %29, %4 : vector<16x128xf32>
    %38 = arith.addf %37, %36 : vector<16x128xf32>
    %c0_11 = arith.constant 0 : index
    %c0_12 = arith.constant 0 : index
    %39 = vector.load %arg2[%c0_11, %c0_12] : memref<1x128xf32, #tpu.memory_space<vmem>>, vector<1x128xf32>
    %40 = vector.broadcast %39 : vector<1x128xf32> to vector<16x128xf32>
    %41 = arith.addf %38, %40 : vector<16x128xf32>
    %42 = math.tanh %41 : vector<16x128xf32>
    %c1_i32_13 = arith.constant 1 : i32
    %43 = vector.broadcast %c1_i32_13 : i32 to vector<16x128xi32>
    %44 = arith.cmpi sge, %22, %43 : vector<16x128xi32>
    %cst_14 = arith.constant 0.000000e+00 : f32
    %45 = vector.broadcast %cst_14 : f32 to vector<1x128xf32>
    %46 = vector.extract_strided_slice %42 {offsets = [0, 0], sizes = [15, 128], strides = [1, 1]} : vector<16x128xf32> to vector<15x128xf32>
    %47 = tpu.concatenate %45, %46 in 0 : vector<1x128xf32>, vector<15x128xf32> -> vector<16x128xf32>
    %cst_15 = arith.constant 0xFF800000 : f32
    %48 = vector.broadcast %cst_15 : f32 to vector<16x128xf32>
    %49 = arith.select %44, %47, %48 : vector<16x128xi1>, vector<16x128xf32>
    %50 = arith.maximumf %42, %49 : vector<16x128xf32>
    %c2_i32 = arith.constant 2 : i32
    %51 = vector.broadcast %c2_i32 : i32 to vector<16x128xi32>
    %52 = arith.cmpi sge, %22, %51 : vector<16x128xi32>
    %cst_16 = arith.constant 0.000000e+00 : f32
    %53 = vector.broadcast %cst_16 : f32 to vector<2x128xf32>
    %54 = vector.extract_strided_slice %50 {offsets = [0, 0], sizes = [14, 128], strides = [1, 1]} : vector<16x128xf32> to vector<14x128xf32>
    %55 = tpu.concatenate %53, %54 in 0 : vector<2x128xf32>, vector<14x128xf32> -> vector<16x128xf32>
    %cst_17 = arith.constant 0xFF800000 : f32
    %56 = vector.broadcast %cst_17 : f32 to vector<16x128xf32>
    %57 = arith.select %52, %55, %56 : vector<16x128xi1>, vector<16x128xf32>
    %58 = arith.maximumf %50, %57 : vector<16x128xf32>
    %c4_i32 = arith.constant 4 : i32
    %59 = vector.broadcast %c4_i32 : i32 to vector<16x128xi32>
    %60 = arith.cmpi sge, %22, %59 : vector<16x128xi32>
    %cst_18 = arith.constant 0.000000e+00 : f32
    %61 = vector.broadcast %cst_18 : f32 to vector<4x128xf32>
    %62 = vector.extract_strided_slice %58 {offsets = [0, 0], sizes = [12, 128], strides = [1, 1]} : vector<16x128xf32> to vector<12x128xf32>
    %63 = tpu.concatenate %61, %62 in 0 : vector<4x128xf32>, vector<12x128xf32> -> vector<16x128xf32>
    %cst_19 = arith.constant 0xFF800000 : f32
    %64 = vector.broadcast %cst_19 : f32 to vector<16x128xf32>
    %65 = arith.select %60, %63, %64 : vector<16x128xi1>, vector<16x128xf32>
    %66 = arith.maximumf %58, %65 : vector<16x128xf32>
    %c7_i32 = arith.constant 7 : i32
    %67 = vector.broadcast %c7_i32 : i32 to vector<16x128xi32>
    %68 = arith.cmpi slt, %22, %67 : vector<16x128xi32>
    %69 = vector.extract_strided_slice %42 {offsets = [1, 0], sizes = [15, 128], strides = [1, 1]} : vector<16x128xf32> to vector<15x128xf32>
    %cst_20 = arith.constant 0.000000e+00 : f32
    %70 = vector.broadcast %cst_20 : f32 to vector<1x128xf32>
    %71 = tpu.concatenate %69, %70 in 0 : vector<15x128xf32>, vector<1x128xf32> -> vector<16x128xf32>
    %cst_21 = arith.constant 0xFF800000 : f32
    %72 = vector.broadcast %cst_21 : f32 to vector<16x128xf32>
    %73 = arith.select %68, %71, %72 : vector<16x128xi1>, vector<16x128xf32>
    %74 = arith.maximumf %42, %73 : vector<16x128xf32>
    %c6_i32_22 = arith.constant 6 : i32
    %75 = vector.broadcast %c6_i32_22 : i32 to vector<16x128xi32>
    %76 = arith.cmpi slt, %22, %75 : vector<16x128xi32>
    %77 = vector.extract_strided_slice %74 {offsets = [2, 0], sizes = [14, 128], strides = [1, 1]} : vector<16x128xf32> to vector<14x128xf32>
    %cst_23 = arith.constant 0.000000e+00 : f32
    %78 = vector.broadcast %cst_23 : f32 to vector<2x128xf32>
    %79 = tpu.concatenate %77, %78 in 0 : vector<14x128xf32>, vector<2x128xf32> -> vector<16x128xf32>
    %cst_24 = arith.constant 0xFF800000 : f32
    %80 = vector.broadcast %cst_24 : f32 to vector<16x128xf32>
    %81 = arith.select %76, %79, %80 : vector<16x128xi1>, vector<16x128xf32>
    %82 = arith.maximumf %74, %81 : vector<16x128xf32>
    %c4_i32_25 = arith.constant 4 : i32
    %83 = vector.broadcast %c4_i32_25 : i32 to vector<16x128xi32>
    %84 = arith.cmpi slt, %22, %83 : vector<16x128xi32>
    %85 = vector.extract_strided_slice %82 {offsets = [4, 0], sizes = [12, 128], strides = [1, 1]} : vector<16x128xf32> to vector<12x128xf32>
    %cst_26 = arith.constant 0.000000e+00 : f32
    %86 = vector.broadcast %cst_26 : f32 to vector<4x128xf32>
    %87 = tpu.concatenate %85, %86 in 0 : vector<12x128xf32>, vector<4x128xf32> -> vector<16x128xf32>
    %cst_27 = arith.constant 0xFF800000 : f32
    %88 = vector.broadcast %cst_27 : f32 to vector<16x128xf32>
    %89 = arith.select %84, %87, %88 : vector<16x128xi1>, vector<16x128xf32>
    %90 = arith.maximumf %82, %89 : vector<16x128xf32>
    %91 = vector.extract_strided_slice %90 {offsets = [1, 0], sizes = [15, 128], strides = [1, 1]} : vector<16x128xf32> to vector<15x128xf32>
    %cst_28 = arith.constant 0.000000e+00 : f32
    %92 = vector.broadcast %cst_28 : f32 to vector<1x128xf32>
    %93 = tpu.concatenate %91, %92 in 0 : vector<15x128xf32>, vector<1x128xf32> -> vector<16x128xf32>
    %94 = vector.extract_strided_slice %66 {offsets = [0, 0], sizes = [8, 8], strides = [1, 1]} : vector<16x128xf32> to vector<8x8xf32>
    %95 = vector.extract_strided_slice %66 {offsets = [8, 0], sizes = [8, 8], strides = [1, 1]} : vector<16x128xf32> to vector<8x8xf32>
    %96 = vector.extract_strided_slice %93 {offsets = [0, 0], sizes = [8, 8], strides = [1, 1]} : vector<16x128xf32> to vector<8x8xf32>
    %97 = vector.extract_strided_slice %93 {offsets = [8, 0], sizes = [8, 8], strides = [1, 1]} : vector<16x128xf32> to vector<8x8xf32>
    %98 = tpu.concatenate %94, %95, %96, %97 in 1 : vector<8x8xf32>, vector<8x8xf32>, vector<8x8xf32>, vector<8x8xf32> -> vector<8x32xf32>
    %99 = vector.extract_strided_slice %66 {offsets = [0, 8], sizes = [8, 8], strides = [1, 1]} : vector<16x128xf32> to vector<8x8xf32>
    %100 = vector.extract_strided_slice %66 {offsets = [8, 8], sizes = [8, 8], strides = [1, 1]} : vector<16x128xf32> to vector<8x8xf32>
    %101 = vector.extract_strided_slice %93 {offsets = [0, 8], sizes = [8, 8], strides = [1, 1]} : vector<16x128xf32> to vector<8x8xf32>
    %102 = vector.extract_strided_slice %93 {offsets = [8, 8], sizes = [8, 8], strides = [1, 1]} : vector<16x128xf32> to vector<8x8xf32>
    %103 = tpu.concatenate %99, %100, %101, %102 in 1 : vector<8x8xf32>, vector<8x8xf32>, vector<8x8xf32>, vector<8x8xf32> -> vector<8x32xf32>
    %104 = tpu.concatenate %98, %103 in 0 : vector<8x32xf32>, vector<8x32xf32> -> vector<16x32xf32>
    %c0_29 = arith.constant 0 : index
    %c0_30 = arith.constant 0 : index
    %105 = vector.load %arg5[%c0_29, %c0_30] : memref<1x128xf32, #tpu.memory_space<vmem>>, vector<1x128xf32>
    %106 = arith.truncf %104 : vector<16x32xf32> to vector<16x32xbf16>
    %c0_31 = arith.constant 0 : index
    %c0_32 = arith.constant 0 : index
    %107 = vector.load %arg3[%c0_31, %c0_32] : memref<32x128xbf16, #tpu.memory_space<vmem>>, vector<32x128xbf16>
    %cst_33 = arith.constant dense<0.000000e+00> : vector<16x128xf32>
    %108 = tpu.matmul %106, %107, %cst_33 {dimension_numbers = #tpu.dot_dimension_numbers<[1], [0], [0], [1], [0, 0, 1, 1], [], []>} : vector<16x32xbf16>, vector<32x128xbf16>, vector<16x128xf32> -> vector<16x128xf32>
    %109 = vector.broadcast %105 : vector<1x128xf32> to vector<16x128xf32>
    %110 = arith.addf %108, %109 : vector<16x128xf32>
    %c0_34 = arith.constant 0 : index
    %c0_35 = arith.constant 0 : index
    %111 = vector.load %arg6[%c0_34, %c0_35] : memref<16x128xf32, #tpu.memory_space<vmem>>, vector<16x128xf32>
    tpu.vector_store %arg6[%c0_34, %c0_35], %110 {strides = array<i32>} : memref<16x128xf32, #tpu.memory_space<vmem>>, vector<16x128xf32>,
    %112 = vector.extract_strided_slice %66 {offsets = [7, 0], sizes = [1, 128], strides = [1, 1]} : vector<16x128xf32> to vector<1x128xf32>
    %113 = vector.extract_strided_slice %66 {offsets = [15, 0], sizes = [1, 128], strides = [1, 1]} : vector<16x128xf32> to vector<1x128xf32>
    %114 = tpu.concatenate %112, %113 in 0 : vector<1x128xf32>, vector<1x128xf32> -> vector<2x128xf32>
    %115 = arith.truncf %114 : vector<2x128xf32> to vector<2x128xbf16>
    %c0_36 = arith.constant 0 : index
    %c0_37 = arith.constant 0 : index
    %116 = vector.load %arg4[%c0_36, %c0_37] : memref<128x128xbf16, #tpu.memory_space<vmem>>, vector<128x128xbf16>
    %cst_38 = arith.constant dense<0.000000e+00> : vector<2x128xf32>
    %117 = tpu.matmul %115, %116, %cst_38 {dimension_numbers = #tpu.dot_dimension_numbers<[1], [0], [0], [1], [0, 0, 1, 1], [], []>} : vector<2x128xbf16>, vector<128x128xbf16>, vector<2x128xf32> -> vector<2x128xf32>
    %118 = vector.extract_strided_slice %117 {offsets = [0, 0], sizes = [1, 128], strides = [1, 1]} : vector<2x128xf32> to vector<1x128xf32>
    %119 = arith.addf %118, %105 : vector<1x128xf32>
    %c7 = arith.constant 7 : index
    %c0_39 = arith.constant 0 : index
    %120 = vector.load %arg6[%c7, %c0_39] : memref<16x128xf32, #tpu.memory_space<vmem>>, vector<1x128xf32>
    tpu.vector_store %arg6[%c7, %c0_39], %119 {strides = array<i32>} : memref<16x128xf32, #tpu.memory_space<vmem>>, vector<1x128xf32>,
    %121 = vector.extract_strided_slice %117 {offsets = [1, 0], sizes = [1, 128], strides = [1, 1]} : vector<2x128xf32> to vector<1x128xf32>
    %122 = arith.addf %121, %105 : vector<1x128xf32>
    %c15 = arith.constant 15 : index
    %c0_40 = arith.constant 0 : index
    %123 = vector.load %arg6[%c15, %c0_40] : memref<16x128xf32, #tpu.memory_space<vmem>>, vector<1x128xf32>
    tpu.vector_store %arg6[%c15, %c0_40], %122 {strides = array<i32>} : memref<16x128xf32, #tpu.memory_space<vmem>>, vector<1x128xf32>,
    return
  }
}

</mosaic_0001>

<llo_original>
// kernel: dmcnn_t_forward.1
$region0: #{dmcnn_t_forward.1}
  #allocation0 [shape = 'u32[]', space=smem, size = 0x4, offset = 0x4, fixed_abs, tag = 'smem constant byte address 0x4 - core index']
  #allocation1 [shape = 'u32[144,128]{1,0:T(1,128)}', space=vmem, size = 0x12000, scoped, tag = 'internal scratch']
  %s0 = inlined_call_operand.vmem [shape: bf16[16,32], index: 0, kind: input, shape index: {}]
  %s1 = inlined_call_operand.hbm [shape: bf16[32,384], index: 1, kind: input, shape index: {}]
  %s2 = inlined_call_operand.vmem [shape: f32[1,128], index: 2, kind: input, shape index: {}]
  %s3 = inlined_call_operand.vmem [shape: bf16[32,128], index: 3, kind: input, shape index: {}]
  %s4 = inlined_call_operand.hbm [shape: bf16[128,128], index: 4, kind: input, shape index: {}]
  %s5 = inlined_call_operand.vmem [shape: f32[1,128], index: 5, kind: input, shape index: {}]
  %s6 = inlined_call_operand.hbm [shape: f32[16,128], index: 6, kind: output, shape index: {}]
  %s7 = sld [smem:[#allocation0]]
  $region42: #{dmcnn_t_forward.1} parent=0
    _
  %s9 = ssub.s32 1, %s7
  %s10 = scalar_select 0, %s9, %s7
  $region1: #{dmcnn_t_forward.1} parent=0
    #allocation2 [shape = 'u8[24576]{0}', space=vmem, size = 0x6000, scoped, tag = 'input window, operand 1, single buffered']
    #allocation3 [shape = 's32[1]{0}', space=sflag, size = 0x4, scoped, tag = 'scoped memory for dmcnn_t_forward.1']
    #allocation4 [shape = 's32[1]{0}', space=sflag, size = 0x4, scoped, tag = 'scoped memory for dmcnn_t_forward.1']
    #allocation5 [shape = 'u8[32768]{0}', space=vmem, size = 0x8000, scoped, tag = 'input window, operand 4, single buffered']
    #allocation6 [shape = 's32[1]{0}', space=sflag, size = 0x4, scoped, tag = 'scoped memory for dmcnn_t_forward.1']
    #allocation7 [shape = 'u8[8192]{0}', space=vmem, size = 0x2000, scoped, tag = 'output window, operand 0, single buffered']
    %11 = vsyncpa [#allocation3], 0
    %12 = vsyncpa [#allocation6], 0
    %13 = vsyncpa [#allocation4], 0
    // Predicated region
    $region2: #{dmcnn_t_forward.1} parent=1 // pred_check
      _
    $region3: #{dmcnn_t_forward.1} parent=1 // pred_check_branch
      %15 = sbr.rel (0) target = $region5
    $region4: #{dmcnn_t_forward.1} parent=1 // pred_region
      _
    $region5: #{dmcnn_t_forward.1} parent=1 // pred_fallthru
      _
    // Predicated region
    $region6: #{dmcnn_t_forward.1} parent=1 // pred_check
      _
    $region7: #{dmcnn_t_forward.1} parent=1 // pred_check_branch
      %17 = sbr.rel (0) target = $region9
    $region8: #{dmcnn_t_forward.1} parent=1 // pred_region
      %s19 = ssub.s32 768, 768
      %20 = vsyncadd [#allocation3], %s19
      %s21 = sshll.u32 [#allocation2], 4
      %s22 = int_to_ptr.vmem [resolvable:$true] %s21
      %27 = dma.hbm_to_vmem [thread:$0]  %s1, 768, %s22, [#allocation3], 192, 192, 12
    $region9: #{dmcnn_t_forward.1} parent=1 // pred_fallthru
      _
    // Predicated region
    $region10: #{dmcnn_t_forward.1} parent=1 // pred_check
      _
    $region11: #{dmcnn_t_forward.1} parent=1 // pred_check_branch
      %29 = sbr.rel (0) target = $region13
    $region12: #{dmcnn_t_forward.1} parent=1 // pred_region
      _
    $region13: #{dmcnn_t_forward.1} parent=1 // pred_fallthru
      _
    // Predicated region
    $region14: #{dmcnn_t_forward.1} parent=1 // pred_check
      _
    $region15: #{dmcnn_t_forward.1} parent=1 // pred_check_branch
      %31 = sbr.rel (0) target = $region17
    $region16: #{dmcnn_t_forward.1} parent=1 // pred_region
      _
    $region17: #{dmcnn_t_forward.1} parent=1 // pred_fallthru
      _
    // Predicated region
    $region18: #{dmcnn_t_forward.1} parent=1 // pred_check
      _
    $region19: #{dmcnn_t_forward.1} parent=1 // pred_check_branch
      %33 = sbr.rel (0) target = $region21
    $region20: #{dmcnn_t_forward.1} parent=1 // pred_region
      %s35 = ssub.s32 1024, 1024
      %36 = vsyncadd [#allocation6], %s35
      %s37 = sshll.u32 [#allocation5], 4
      %s38 = int_to_ptr.vmem [resolvable:$true] %s37
      %43 = dma.hbm_to_vmem [thread:$0]  %s4, 1024, %s38, [#allocation6], 64, 64, 4
    $region21: #{dmcnn_t_forward.1} parent=1 // pred_fallthru
      _
    // Predicated region
    $region22: #{dmcnn_t_forward.1} parent=1 // pred_check
      _
    $region23: #{dmcnn_t_forward.1} parent=1 // pred_check_branch
      %45 = sbr.rel (0) target = $region25
    $region24: #{dmcnn_t_forward.1} parent=1 // pred_region
      _
    $region25: #{dmcnn_t_forward.1} parent=1 // pred_fallthru
      _
    // Predicated region
    $region26: #{dmcnn_t_forward.1} parent=1 // pred_check
      _
    $region27: #{dmcnn_t_forward.1} parent=1 // pred_check_branch
      %47 = sbr.rel (0) target = $region29
    $region28: #{dmcnn_t_forward.1} parent=1 // pred_region
      %48 = dma.done [#allocation3], 768
    $region29: #{dmcnn_t_forward.1} parent=1 // pred_fallthru
      _
    // Predicated region
    $region30: #{dmcnn_t_forward.1} parent=1 // pred_check
      _
    $region31: #{dmcnn_t_forward.1} parent=1 // pred_check_branch
      %50 = sbr.rel (0) target = $region33
    $region32: #{dmcnn_t_forward.1} parent=1 // pred_region
      %51 = dma.done [#allocation6], 1024
    $region33: #{dmcnn_t_forward.1} parent=1 // pred_fallthru
      _
    %v53 = vld [vmem:[%s0] sm:$0xf]
    %v54 = vld [vmem:[%s0 + $0x4] sm:$0xf]
    %v55 = vld [vmem:[#allocation2] sm:$0xff]
    %v56 = vld [vmem:[#allocation2 + $0x8] sm:$0xf]
    %v57 = vld [vmem:[#allocation2 + $0xc] sm:$0xff]
    %v58 = vld [vmem:[#allocation2 + $0x14] sm:$0xf]
    %v59 = vld [vmem:[#allocation2 + $0x18] sm:$0xff]
    %v60 = vld [vmem:[#allocation2 + $0x20] sm:$0xf]
    %v61 = vld [vmem:[#allocation2 + $0x24] sm:$0xff]
    %v62 = vld [vmem:[#allocation2 + $0x2c] sm:$0xf]
    %v65 = vunpack.c.l.b16 %v53
    %v66 = vunpack.c.l.b16 %v54
    %v67 = vpack.c.b16 %v66, %v65
    %v76 = vunpack.c.l.b16 %v55
    %v77 = vunpack.c.h.b16 %v55
    %v78 = vunpack.c.l.b16 %v56
    %v79 = vunpack.c.l.b16 %v57
    %v80 = vunpack.c.h.b16 %v57
    %v81 = vunpack.c.l.b16 %v58
    %v82 = vunpack.c.l.b16 %v59
    %v83 = vunpack.c.h.b16 %v59
    %v84 = vunpack.c.l.b16 %v60
    %v85 = vunpack.c.l.b16 %v61
    %v86 = vunpack.c.h.b16 %v61
    %v87 = vunpack.c.l.b16 %v62
    %v88 = vpack.c.b16 %v79, %v76
    %v89 = vpack.c.b16 %v80, %v77
    %v90 = vpack.c.b16 %v81, %v78
    %v91 = vpack.c.b16 %v85, %v82
    %v92 = vpack.c.b16 %v86, %v83
    %v93 = vpack.c.b16 %v87, %v84
    %vm100 = vcmask 261120
    %v102 = vsel %vm100, %v67, 0
    %104 = vmatprep.subr.bf16.mxu0 0
    %105 = vmatpush1.bf16.msra.mxu0 0
    %106 = vmatprep.subr.bf16.mxu0 0
    %107 = vmatpush1.bf16.msra.mxu0 0
    %108 = vmatprep.subr.bf16.mxu0 0
    %109 = vmatpush1.bf16.msra.mxu0 0
    %110 = vmatprep.subr.bf16.mxu0 0
    %111 = vmatpush1.bf16.msra.mxu0 0
    %112 = vmatprep.subr.bf16.mxu0 0
    %113 = vmatpush1.bf16.msra.mxu0 0
    %114 = vmatprep.subr.bf16.mxu0 0
    %115 = vmatpush1.bf16.msra.mxu0 0
    %116 = vmatprep.subr.bf16.mxu0 %v92
    %117 = vmatpush1.bf16.msra.mxu0 %v91
    %118 = vmatprep.subr.bf16.mxu0 %v89
    %119 = vmatpush1.bf16.msra.mxu0 %v88
    %120 = vmatprep.subr.bf16.mxu0 0
    %121 = vmatpush2.bf16.msra.mxu0 0
    %122 = vmatprep.subr.bf16.mxu0 0
    %123 = vmatpush2.bf16.msra.mxu0 0
    %124 = vmatprep.subr.bf16.mxu0 0
    %125 = vmatpush2.bf16.msra.mxu0 0
    %126 = vmatprep.subr.bf16.mxu0 0
    %127 = vmatpush2.bf16.msra.mxu0 0
    %128 = vmatprep.subr.bf16.mxu0 0
    %129 = vmatpush2.bf16.msra.mxu0 0
    %130 = vmatprep.subr.bf16.mxu0 0
    %131 = vmatpush2.bf16.msra.mxu0 0
    %132 = vmatprep.subr.bf16.mxu0 0
    %133 = vmatpush2.bf16.msra.mxu0 0
    %134 = vmatprep.subr.bf16.mxu0 0
    %135 = vmatpush2.bf16.msra.mxu0 0
    %136 = vmatprep.mubr.bf16.mxu0 0
    %137 = vmatmul.mubr.bf16.gmra.mxu0 %v102
    %v138 = vpop.f32.mrf.mxu0
    %v139 = vadd.f32 0.0, %v138
    %v140 = vpop.f32.mrf.mxu0
    %v141 = vadd.f32 0.0, %v140
    %v142 = vpop.f32.mrf.mxu0
    %v143 = vadd.f32 0.0, %v142
    %v144 = vpop.f32.mrf.mxu0
    %v145 = vadd.f32 0.0, %v144
    %146 = vdwg.mxu0
    %147 = vmatprep.subr.bf16.mxu0 0
    %148 = vmatpush1.bf16.msra.mxu0 0
    %149 = vmatprep.subr.bf16.mxu0 0
    %150 = vmatpush1.bf16.msra.mxu0 0
    %151 = vmatprep.subr.bf16.mxu0 0
    %152 = vmatpush1.bf16.msra.mxu0 0
    %153 = vmatprep.subr.bf16.mxu0 0
    %154 = vmatpush1.bf16.msra.mxu0 0
    %155 = vmatprep.subr.bf16.mxu0 0
    %156 = vmatpush1.bf16.msra.mxu0 0
    %157 = vmatprep.subr.bf16.mxu0 0
    %158 = vmatpush1.bf16.msra.mxu0 0
    %159 = vmatprep.subr.bf16.mxu0 0
    %160 = vmatpush1.bf16.msra.mxu0 %v93
    %161 = vmatprep.subr.bf16.mxu0 0
    %162 = vmatpush1.bf16.msra.mxu0 %v90
    %163 = vmatprep.subr.bf16.mxu0 0
    %164 = vmatpush2.bf16.msra.mxu0 0
    %165 = vmatprep.subr.bf16.mxu0 0
    %166 = vmatpush2.bf16.msra.mxu0 0
    %167 = vmatprep.subr.bf16.mxu0 0
    %168 = vmatpush2.bf16.msra.mxu0 0
    %169 = vmatprep.subr.bf16.mxu0 0
    %170 = vmatpush2.bf16.msra.mxu0 0
    %171 = vmatprep.subr.bf16.mxu0 0
    %172 = vmatpush2.bf16.msra.mxu0 0
    %173 = vmatprep.subr.bf16.mxu0 0
    %174 = vmatpush2.bf16.msra.mxu0 0
    %175 = vmatprep.subr.bf16.mxu0 0
    %176 = vmatpush2.bf16.msra.mxu0 0
    %177 = vmatprep.subr.bf16.mxu0 0
    %178 = vmatpush2.bf16.msra.mxu0 0
    %179 = vmatprep.mubr.bf16.mxu0 0
    %180 = vmatmul.mubr.bf16.gmra.mxu0 %v102
    %v181 = vpop.f32.mrf.mxu0
    %v182 = vadd.f32 0.0, %v181
    %v183 = vpop.f32.mrf.mxu0
    %v184 = vpop.f32.mrf.mxu0
    %v185 = vadd.f32 0.0, %v184
    %v186 = vpop.f32.mrf.mxu0
    %187 = vdwg.mxu0
    %v188 = vlaneseq
    %v189 = vshrl.u32 %v188, 7
    %v190 = vadd.s32 %v189, 8
    %vm191 = vcmp.lt.s32.totalorder %v189, 0
    %v192 = vsub.s32 0, %v189
    %v193 = vsel %vm191, %v192, %v189
    %v194 = vshrl.u32 %v193, 3
    %v195 = vand.u32 %v193, 7
    %v196 = vsub.s32 0, %v195
    %v197 = vsel %vm191, %v196, %v195
    %vm198 = vcmp.lt.s32.totalorder %v190, 0
    %v199 = vsub.s32 0, %v190
    %v200 = vsel %vm198, %v199, %v190
    %v201 = vshrl.u32 %v200, 3
    %v202 = vand.u32 %v200, 7
    %v203 = vsub.s32 0, %v202
    %v204 = vsel %vm198, %v203, %v202
    %vm205 = vcmp.ne.s32.totalorder %v197, 0
    %vm206 = vcmp.ne.s32.totalorder %v204, 0
    %vm207 = vcmp.lt.s32.totalorder %v197, 0
    %vm208 = vcmp.lt.s32.totalorder %v204, 0
    %vm209 = vmand %vm207, %vm205
    %vm210 = vmand %vm208, %vm206
    %v211 = vadd.s32 %v197, 8
    %v212 = vadd.s32 %v204, 8
    %v213 = vsel %vm209, %v211, %v197
    %v214 = vsel %vm210, %v212, %v204
    %vm215 = vcmp.ge.s32.totalorder %v213, 1
    %vm216 = vcmp.ge.s32.totalorder %v214, 1
    %vm219 = vcmask 1040384
    %v220 = vrot.slane %v139, 7
    %v221 = vrot.slane %v143, 7
    %v222 = vsel %vm219, %v220, %v221
    %v225 = vsel %vm219, 0.0, %v220
    %v226 = vsel %vm215, %v225, 0.0
    %v227 = vsel %vm216, %v222, 0.0
    %vm228 = vcmp.le.s32.totalorder %v213, 6
    %vm229 = vcmp.le.s32.totalorder %v214, 6
    %vm232 = vcmask 1046528
    %v233 = vrot.slane %v182, 1
    %v234 = vrot.slane %v185, 1
    %v235 = vsel %vm232, %v233, %v234
    %v238 = vsel %vm232, %v234, 0.0
    %v239 = vsel %vm228, %v235, 0.0
    %v240 = vsel %vm229, %v238, 0.0
    %v241 = vadd.f32 %v226, %v141
    %v242 = vadd.f32 %v227, %v145
    %v243 = vadd.f32 %v241, %v239
    %v244 = vadd.f32 %v242, %v240
    %v245 = vld [vmem:[%s2] sm:$0x1]
    %v247 = vlaneseq
    %v248 = vshrl.u32 %v247, 7
    %v249 = vsub.s32 0, %v248
    %v250 = vrot.slane %v245, %v249
    %v252 = vadd.f32 %v243, %v250
    %v253 = vadd.f32 %v244, %v250
    %v254 = vtanh.pop %v252
    %v255 = vtanh.pop %v253
    %v258 = vrot.slane %v254, 7
    %v259 = vrot.slane %v255, 7
    %v260 = vsel %vm219, %v258, %v259
    %v263 = vsel %vm219, 0.0, %v258
    %v264 = vsel %vm215, %v263, -inf
    %v265 = vsel %vm216, %v260, -inf
    %v266 = vmax.f32 %v254, %v264
    %v267 = vmax.f32 %v255, %v265
    %vm268 = vcmp.ge.s32.totalorder %v213, 2
    %vm269 = vcmp.ge.s32.totalorder %v214, 2
    %vm272 = vcmask 1041408
    %v273 = vrot.slane %v266, 6
    %v274 = vrot.slane %v267, 6
    %v275 = vsel %vm272, %v273, %v274
    %v278 = vsel %vm272, 0.0, %v273
    %v279 = vsel %vm268, %v278, -inf
    %v280 = vsel %vm269, %v275, -inf
    %v281 = vmax.f32 %v266, %v279
    %v282 = vmax.f32 %v267, %v280
    %vm283 = vcmp.ge.s32.totalorder %v213, 4
    %vm284 = vcmp.ge.s32.totalorder %v214, 4
    %vm287 = vcmask 1043456
    %v288 = vrot.slane %v281, 4
    %v289 = vrot.slane %v282, 4
    %v290 = vsel %vm287, %v288, %v289
    %v293 = vsel %vm287, 0.0, %v288
    %v294 = vsel %vm283, %v293, -inf
    %v295 = vsel %vm284, %v290, -inf
    %v296 = vmax.f32 %v281, %v294
    %v297 = vmax.f32 %v282, %v295
    %vm298 = vcmp.lt.s32.totalorder %v213, 7
    %vm299 = vcmp.lt.s32.totalorder %v214, 7
    %v300 = vrot.slane %v254, 1
    %v301 = vrot.slane %v255, 1
    %v302 = vsel %vm232, %v300, %v301
    %v305 = vsel %vm232, %v301, 0.0
    %v306 = vsel %vm298, %v302, -inf
    %v307 = vsel %vm299, %v305, -inf
    %v308 = vmax.f32 %v254, %v306
    %v309 = vmax.f32 %v255, %v307
    %vm310 = vcmp.lt.s32.totalorder %v213, 6
    %vm311 = vcmp.lt.s32.totalorder %v214, 6
    %vm314 = vcmask 1045504
    %v315 = vrot.slane %v308, 2
    %v316 = vrot.slane %v309, 2
    %v317 = vsel %vm314, %v315, %v316
    %v320 = vsel %vm314, %v316, 0.0
    %v321 = vsel %vm310, %v317, -inf
    %v322 = vsel %vm311, %v320, -inf
    %v323 = vmax.f32 %v308, %v321
    %v324 = vmax.f32 %v309, %v322
    %vm325 = vcmp.lt.s32.totalorder %v213, 4
    %vm326 = vcmp.lt.s32.totalorder %v214, 4
    %v329 = vrot.slane %v323, 4
    %v330 = vrot.slane %v324, 4
    %v331 = vsel %vm287, %v329, %v330
    %v334 = vsel %vm287, %v330, 0.0
    %v335 = vsel %vm325, %v331, -inf
    %v336 = vsel %vm326, %v334, -inf
    %v337 = vmax.f32 %v323, %v335
    %v338 = vmax.f32 %v324, %v336
    %v341 = vrot.slane %v337, 1
    %v342 = vrot.slane %v338, 1
    %v343 = vsel %vm232, %v341, %v342
    %v345 = vsel %vm232, %v342, 0.0
    %347 = vrot.lane.b32.xlu0 %v297, 8
    %v348 = vpop.permute.xlu0 %347
    %350 = vrot.lane.b32.xlu0 %v343, 16
    %v351 = vpop.permute.xlu0 %350
    %354 = vrot.lane.b32.xlu0 %v345, 24
    %v355 = vpop.permute.xlu0 %354
    %vm357 = vcmask 64512
    %v358 = vsel %vm357, %v296, %v348
    %vm359 = vcmask 130048
    %v360 = vsel %vm359, %v358, %v351
    %vm361 = vcmask 195584
    %v362 = vsel %vm361, %v360, %v355
    %364 = vrot.lane.b32.xlu0 %v296, 120
    %v365 = vpop.permute.xlu0 %364
    %367 = vrot.lane.b32.xlu0 %v343, 8
    %v368 = vpop.permute.xlu0 %367
    %370 = vrot.lane.b32.xlu0 %v345, 16
    %v371 = vpop.permute.xlu0 %370
    %v373 = vsel %vm357, %v365, %v297
    %v374 = vsel %vm359, %v373, %v368
    %v375 = vsel %vm361, %v374, %v371
    %v376 = vld [vmem:[%s5] sm:$0x1]
    %v377 = vpack.c.bf16 %v375, %v362
    %v378 = vld [vmem:[%s3] sm:$0xf]
    %v379 = vld [vmem:[%s3 + $0x4] sm:$0xf]
    %v380 = vld [vmem:[%s3 + $0x8] sm:$0xf]
    %v381 = vld [vmem:[%s3 + $0xc] sm:$0xf]
    %v383 = vlaneseq
    %v384 = vshrl.u32 %v383, 7
    %v385 = vsub.s32 0, %v384
    %v386 = vrot.slane %v376, %v385
    %v392 = vunpack.c.l.b16 %v378
    %v393 = vunpack.c.l.b16 %v379
    %v394 = vunpack.c.l.b16 %v380
    %v395 = vunpack.c.l.b16 %v381
    %v396 = vpack.c.b16 %v393, %v392
    %v397 = vpack.c.b16 %v395, %v394
    %v401 = vsel %vm100, %v377, 0
    %403 = vmatprep.subr.bf16.mxu0 0
    %404 = vmatpush1.bf16.msra.mxu0 0
    %405 = vmatprep.subr.bf16.mxu0 0
    %406 = vmatpush1.bf16.msra.mxu0 0
    %407 = vmatprep.subr.bf16.mxu0 0
    %408 = vmatpush1.bf16.msra.mxu0 0
    %409 = vmatprep.subr.bf16.mxu0 0
    %410 = vmatpush1.bf16.msra.mxu0 0
    %411 = vmatprep.subr.bf16.mxu0 0
    %412 = vmatpush1.bf16.msra.mxu0 0
    %413 = vmatprep.subr.bf16.mxu0 0
    %414 = vmatpush1.bf16.msra.mxu0 0
    %415 = vmatprep.subr.bf16.mxu0 0
    %416 = vmatpush1.bf16.msra.mxu0 %v397
    %417 = vmatprep.subr.bf16.mxu0 0
    %418 = vmatpush1.bf16.msra.mxu0 %v396
    %419 = vmatprep.subr.bf16.mxu0 0
    %420 = vmatpush2.bf16.msra.mxu0 0
    %421 = vmatprep.subr.bf16.mxu0 0
    %422 = vmatpush2.bf16.msra.mxu0 0
    %423 = vmatprep.subr.bf16.mxu0 0
    %424 = vmatpush2.bf16.msra.mxu0 0
    %425 = vmatprep.subr.bf16.mxu0 0
    %426 = vmatpush2.bf16.msra.mxu0 0
    %427 = vmatprep.subr.bf16.mxu0 0
    %428 = vmatpush2.bf16.msra.mxu0 0
    %429 = vmatprep.subr.bf16.mxu0 0
    %430 = vmatpush2.bf16.msra.mxu0 0
    %431 = vmatprep.subr.bf16.mxu0 0
    %432 = vmatpush2.bf16.msra.mxu0 0
    %433 = vmatprep.subr.bf16.mxu0 0
    %434 = vmatpush2.bf16.msra.mxu0 0
    %435 = vmatprep.mubr.bf16.mxu0 0
    %436 = vmatmul.mubr.bf16.gmra.mxu0 %v401
    %v437 = vpop.f32.mrf.mxu0
    %v438 = vadd.f32 %v386, %v437
    %v439 = vpop.f32.mrf.mxu0
    %v440 = vpop.f32.mrf.mxu0
    %v441 = vadd.f32 %v386, %v440
    %v442 = vpop.f32.mrf.mxu0
    %443 = vdwg.mxu0
    %444 = vst [vmem:[#allocation7] sm:$0xff] %v438
    %445 = vst [vmem:[#allocation7 + $0x8] sm:$0xff] %v441
    %v446 = vrot.slane %v296, 7
    %v448 = vrot.slane %v297, 6
    %v450 = vsel %vm219, %v446, %v448
    %v451 = vpack.c.bf16 %v450, %v450
    %v452 = vld [vmem:[#allocation5] sm:$0xf]
    %v453 = vld [vmem:[#allocation5 + $0x4] sm:$0xf]
    %v454 = vld [vmem:[#allocation5 + $0x8] sm:$0xf]
    %v455 = vld [vmem:[#allocation5 + $0xc] sm:$0xf]
    %v456 = vld [vmem:[#allocation5 + $0x10] sm:$0xf]
    %v457 = vld [vmem:[#allocation5 + $0x14] sm:$0xf]
    %v458 = vld [vmem:[#allocation5 + $0x18] sm:$0xf]
    %v459 = vld [vmem:[#allocation5 + $0x1c] sm:$0xf]
    %v460 = vld [vmem:[#allocation5 + $0x20] sm:$0xf]
    %v461 = vld [vmem:[#allocation5 + $0x24] sm:$0xf]
    %v462 = vld [vmem:[#allocation5 + $0x28] sm:$0xf]
    %v463 = vld [vmem:[#allocation5 + $0x2c] sm:$0xf]
    %v464 = vld [vmem:[#allocation5 + $0x30] sm:$0xf]
    %v465 = vld [vmem:[#allocation5 + $0x34] sm:$0xf]
    %v466 = vld [vmem:[#allocation5 + $0x38] sm:$0xf]
    %v467 = vld [vmem:[#allocation5 + $0x3c] sm:$0xf]
    %v484 = vunpack.c.l.b16 %v452
    %v485 = vunpack.c.l.b16 %v453
    %v486 = vunpack.c.l.b16 %v454
    %v487 = vunpack.c.l.b16 %v455
    %v488 = vunpack.c.l.b16 %v456
    %v489 = vunpack.c.l.b16 %v457
    %v490 = vunpack.c.l.b16 %v458
    %v491 = vunpack.c.l.b16 %v459
    %v492 = vunpack.c.l.b16 %v460
    %v493 = vunpack.c.l.b16 %v461
    %v494 = vunpack.c.l.b16 %v462
    %v495 = vunpack.c.l.b16 %v463
    %v496 = vunpack.c.l.b16 %v464
    %v497 = vunpack.c.l.b16 %v465
    %v498 = vunpack.c.l.b16 %v466
    %v499 = vunpack.c.l.b16 %v467
    %v500 = vpack.c.b16 %v485, %v484
    %v501 = vpack.c.b16 %v487, %v486
    %v502 = vpack.c.b16 %v489, %v488
    %v503 = vpack.c.b16 %v491, %v490
    %v504 = vpack.c.b16 %v493, %v492
    %v505 = vpack.c.b16 %v495, %v494
    %v506 = vpack.c.b16 %v497, %v496
    %v507 = vpack.c.b16 %v499, %v498
    %516 = vmatprep.subr.bf16.mxu0 0
    %517 = vmatpush1.bf16.msra.mxu0 %v507
    %518 = vmatprep.subr.bf16.mxu0 0
    %519 = vmatpush1.bf16.msra.mxu0 %v506
    %520 = vmatprep.subr.bf16.mxu0 0
    %521 = vmatpush1.bf16.msra.mxu0 %v505
    %522 = vmatprep.subr.bf16.mxu0 0
    %523 = vmatpush1.bf16.msra.mxu0 %v504
    %524 = vmatprep.subr.bf16.mxu0 0
    %525 = vmatpush1.bf16.msra.mxu0 %v503
    %526 = vmatprep.subr.bf16.mxu0 0
    %527 = vmatpush1.bf16.msra.mxu0 %v502
    %528 = vmatprep.subr.bf16.mxu0 0
    %529 = vmatpush1.bf16.msra.mxu0 %v501
    %530 = vmatprep.subr.bf16.mxu0 0
    %531 = vmatpush1.bf16.msra.mxu0 %v500
    %532 = vmatprep.subr.bf16.mxu0 0
    %533 = vmatpush2.bf16.msra.mxu0 0
    %534 = vmatprep.subr.bf16.mxu0 0
    %535 = vmatpush2.bf16.msra.mxu0 0
    %536 = vmatprep.subr.bf16.mxu0 0
    %537 = vmatpush2.bf16.msra.mxu0 0
    %538 = vmatprep.subr.bf16.mxu0 0
    %539 = vmatpush2.bf16.msra.mxu0 0
    %540 = vmatprep.subr.bf16.mxu0 0
    %541 = vmatpush2.bf16.msra.mxu0 0
    %542 = vmatprep.subr.bf16.mxu0 0
    %543 = vmatpush2.bf16.msra.mxu0 0
    %544 = vmatprep.subr.bf16.mxu0 0
    %545 = vmatpush2.bf16.msra.mxu0 0
    %546 = vmatprep.subr.bf16.mxu0 0
    %547 = vmatpush2.bf16.msra.mxu0 0
    %548 = vmatprep.mubr.bf16.mxu0 0
    %549 = vmatmul.mubr.bf16.gmra.mxu0 %v451
    %v550 = vpop.f32.mrf.mxu0
    %v551 = vadd.f32 0.0, %v550
    %v552 = vpop.f32.mrf.mxu0
    %v553 = vpop.f32.mrf.mxu0
    %v554 = vpop.f32.mrf.mxu0
    %555 = vdwg.mxu0
    %v556 = vadd.f32 %v551, %v376
    %557 = vst [vmem:[#allocation7 + $0x7] sm:$0x1] %v556
    %v558 = vadd.f32 %v551, %v386
    %559 = vst [vmem:[#allocation7 + $0xe] sm:$0x2] %v558
    // Predicated region
    $region34: #{dmcnn_t_forward.1} parent=1 // pred_check
      _
    $region35: #{dmcnn_t_forward.1} parent=1 // pred_check_branch
      %561 = sbr.rel (0) target = $region37
    $region36: #{dmcnn_t_forward.1} parent=1 // pred_region
      %s563 = ssub.s32 256, 256
      %564 = vsyncadd [#allocation4], %s563
      %s565 = sshll.u32 [#allocation7], 4
      %s566 = int_to_ptr.vmem [resolvable:$true] %s565
      %571 = dma.vmem_to_hbm [thread:$0]  %s566, 256, %s6, [#allocation4], 128, 128, 8
    $region37: #{dmcnn_t_forward.1} parent=1 // pred_fallthru
      _
    // Predicated region
    $region38: #{dmcnn_t_forward.1} parent=1 // pred_check
      _
    $region39: #{dmcnn_t_forward.1} parent=1 // pred_check_branch
      %573 = sbr.rel (0) target = $region41
    $region40: #{dmcnn_t_forward.1} parent=1 // pred_region
      %574 = dma.done [#allocation4], 256
    $region41: #{dmcnn_t_forward.1} parent=1 // pred_fallthru
      _
    %575 = vsyncpa [#allocation3], 1
    %576 = vsyncpa [#allocation6], 1
    %577 = vsyncpa [#allocation4], 1

</llo_original>
